<compile_context>
chip_gen: v5e
topology: v5e:2x2
jax: 0.10.0
libtpu: 0.0.40
codegen_flags: <defaults>
</compile_context>

<pallas_src>
import functools

import jax
import jax.numpy as jnp
from jax.experimental import pallas as pl
from jax.experimental.pallas import tpu as pltpu


_MXU_DTYPE = jnp.bfloat16          # MXU operand / inter-kernel activation dtype
_VMEM_LIMIT = 64 * 1024 * 1024     # raise scoped-VMEM limit (32 MiB default)

_P1 = pltpu.CompilerParams(dimension_semantics=("parallel",),
                           vmem_limit_bytes=_VMEM_LIMIT)
_P2 = pltpu.CompilerParams(dimension_semantics=("parallel", "arbitrary"),
                           vmem_limit_bytes=_VMEM_LIMIT)


def _pick_tile(n, max_tile=1024):
    """Flash tile width along the streamed (tgt) axis."""
    if n <= max_tile:
        return n
    for t in (max_tile, 512, 256, 128):
        if n % t == 0:
            return t
    return n  # fallback: full width (only if no 128-multiple divides n)


# ----------------------------------------------------------------------------
# small in-kernel helpers
# ----------------------------------------------------------------------------
def _leaky(x, slope):
    return jnp.where(x >= 0, x, slope * x)


def _l2norm_cols(x, eps=1e-12):
    # F.normalize(p=2, dim=1) for a (C, N) tile: normalize along channels (f32).
    ssq = jnp.sum(x * x, axis=0, keepdims=True)
    return x * jax.lax.rsqrt(jnp.maximum(ssq, eps * eps))


# ----------------------------------------------------------------------------
# Kernel 1: emb_nn1 stand-in  conv(3->C1) -> LeakyReLU(0.2) -> conv(C1->C1)
# ----------------------------------------------------------------------------
def _emb_nn1_kernel(x_ref, w1_ref, b1_ref, w2_ref, b2_ref, o_ref, *, slope):
    x = x_ref[0]                                   # (3, N) f32
    w1 = w1_ref[...]                               # (C1, 3) f32
    # Cin == 3: three broadcast FMAs on the VPU (MXU with K=3 would be <2% util).
    h = (w1[:, 0:1] * x[0:1, :] + w1[:, 1:2] * x[1:2, :]
         + w1[:, 2:3] * x[2:3, :] + b1_ref[...])
    h = _leaky(h, slope)
    y = jnp.dot(w2_ref[...], h.astype(_MXU_DTYPE),
                preferred_element_type=jnp.float32) + b2_ref[...]
    o_ref[0] = y.astype(o_ref.dtype)


def emb_nn1_forward(x, w1, b1, w2, b2, slope=0.2):
    B, _, N = x.shape
    C1 = w1.shape[0]
    return pl.pallas_call(
        functools.partial(_emb_nn1_kernel, slope=slope),
        out_shape=jax.ShapeDtypeStruct((B, C1, N), _MXU_DTYPE),
        grid=(B,),
        in_specs=[pl.BlockSpec((1, 3, N), lambda i: (i, 0, 0)),
                  pl.BlockSpec((C1, 3), lambda i: (0, 0)),
                  pl.BlockSpec((C1, 1), lambda i: (0, 0)),
                  pl.BlockSpec((C1, C1), lambda i: (0, 0)),
                  pl.BlockSpec((C1, 1), lambda i: (0, 0))],
        out_specs=pl.BlockSpec((1, C1, N), lambda i: (i, 0, 0)),
        compiler_params=_P1,
    )(x, w1, b1.reshape(C1, 1), w2.astype(_MXU_DTYPE), b2.reshape(C1, 1))


# ----------------------------------------------------------------------------
# Kernel 2: feature_interaction (flash over N2) fused with Conv1d #1 of emb_nn2
#           (concat folded into split weights) + per-batch BN statistics
# ----------------------------------------------------------------------------
def _inter_conv_kernel(src_ref, tgt_ref, wa_ref, wb_ref, wc_ref, b_ref,
                       y_ref, st_ref, sn_scr, m_scr, l_scr, acc_scr):
    k = pl.program_id(1)

    @pl.when(k == 0)
    def _():
        src = src_ref[0].astype(jnp.float32)
        sn_scr[...] = _l2norm_cols(src).astype(_MXU_DTYPE)
        m_scr[...] = jnp.full_like(m_scr, -jnp.inf)
        l_scr[...] = jnp.zeros_like(l_scr)
        acc_scr[...] = jnp.zeros_like(acc_scr)

    tgt = tgt_ref[0]                                              # (C, TN2) bf16
    tn = _l2norm_cols(tgt.astype(jnp.float32)).astype(_MXU_DTYPE)
    # simi tile oriented (TN2, N1): online-softmax stats stay lane-major on N1,
    # no vector transposes anywhere.
    s = jax.lax.dot_general(tn, sn_scr[...], (((0,), (0,)), ((), ())),
                            preferred_element_type=jnp.float32)   # (TN2, N1)
    m_new = jnp.maximum(m_scr[...], jnp.max(s, axis=0, keepdims=True))  # (1, N1)
    a = jnp.exp(m_scr[...] - m_new)
    p = jnp.exp(s - m_new)                                         # (TN2, N1)
    l_scr[...] = a * l_scr[...] + jnp.sum(p, axis=0, keepdims=True)
    acc_scr[...] = a * acc_scr[...] + jnp.dot(
        tgt, p.astype(_MXU_DTYPE), preferred_element_type=jnp.float32)
    m_scr[...] = m_new

    @pl.when(k == pl.num_programs(1) - 1)
    def _():
        glob_tar = acc_scr[...] * pl.reciprocal(l_scr[...], approx=True)  # (C, N1)
        src = src_ref[0]                                                   # bf16
        gmax = jnp.max(src.astype(jnp.float32), axis=1, keepdims=True)     # (C, 1)
        y = (jnp.dot(wa_ref[...], src, preferred_element_type=jnp.float32)
             + jnp.dot(wb_ref[...], glob_tar.astype(_MXU_DTYPE),
                       preferred_element_type=jnp.float32)
             + jnp.dot(wc_ref[...], gmax.astype(_MXU_DTYPE),
                       preferred_element_type=jnp.float32)       # (Cout,1) bcast
             + b_ref[...])
        y_ref[0] = y.astype(y_ref.dtype)
        st_ref[0] = jnp.concatenate(
            [jnp.sum(y, axis=1, keepdims=True),
             jnp.sum(y * y, axis=1, keepdims=True)], axis=1)      # (Cout, 2) f32


def inter_conv_stats(src_emb, tgt_emb, w1, b1):
    B, C, N1 = src_emb.shape
    N2 = tgt_emb.shape[2]
    Cout = w1.shape[0]
    tn2 = _pick_tile(N2)
    kt = N2 // tn2
    # w @ [s; gt; gs; gt-gs]  ==  wa@s + (wb+wd)@gt + (wc-wd)@gs
    wa = w1[:, 0 * C:1 * C].astype(_MXU_DTYPE)
    wb = (w1[:, 1 * C:2 * C] + w1[:, 3 * C:4 * C]).astype(_MXU_DTYPE)
    wc = (w1[:, 2 * C:3 * C] - w1[:, 3 * C:4 * C]).astype(_MXU_DTYPE)
    return pl.pallas_call(
        _inter_conv_kernel,
        out_shape=(jax.ShapeDtypeStruct((B, Cout, N1), _MXU_DTYPE),
                   jax.ShapeDtypeStruct((B, Cout, 2), jnp.float32)),
        grid=(B, kt),
        in_specs=[pl.BlockSpec((1, C, N1), lambda b, k: (b, 0, 0)),
                  pl.BlockSpec((1, C, tn2), lambda b, k: (b, 0, k)),
                  pl.BlockSpec((Cout, C), lambda b, k: (0, 0)),
                  pl.BlockSpec((Cout, C), lambda b, k: (0, 0)),
                  pl.BlockSpec((Cout, C), lambda b, k: (0, 0)),
                  pl.BlockSpec((Cout, 1), lambda b, k: (0, 0))],
        out_specs=(pl.BlockSpec((1, Cout, N1), lambda b, k: (b, 0, 0)),
                   pl.BlockSpec((1, Cout, 2), lambda b, k: (b, 0, 0))),
        scratch_shapes=[pltpu.VMEM((C, N1), _MXU_DTYPE),
                        pltpu.VMEM((1, N1), jnp.float32),
                        pltpu.VMEM((1, N1), jnp.float32),
                        pltpu.VMEM((C, N1), jnp.float32)],
        compiler_params=_P2,
    )(src_emb, tgt_emb, wa, wb, wc, b1.reshape(Cout, 1).astype(jnp.float32))


# ----------------------------------------------------------------------------
# BN scale/shift from on-chip statistics (training-mode batch stats)
# ----------------------------------------------------------------------------
def bn_scale_shift(stats, gamma, beta, count, eps=1e-5):
    # TODO(synk): training-mode batch stats; eval() would use running stats.
    # TODO(synk): E[x^2]-E[x]^2 can cancel for large-mean channels; switch to a
    # centered two-pass if BN drifts vs the reference.
    s = jnp.sum(stats[..., 0], axis=0)
    ss = jnp.sum(stats[..., 1], axis=0)
    mean = s / count
    var = jnp.maximum(ss / count - mean * mean, 0.0)
    scale = gamma / jnp.sqrt(var + eps)
    shift = beta - mean * scale
    return scale, shift


# ----------------------------------------------------------------------------
# Kernel 3: BN affine + LeakyReLU fused with the next Conv1d (+ BN statistics)
# ----------------------------------------------------------------------------
def _affine_conv_kernel(x_ref, ss_ref, w_ref, b_ref, y_ref, st_ref, *, slope):
    x = x_ref[0].astype(jnp.float32)
    h = _leaky(x * ss_ref[:, 0:1] + ss_ref[:, 1:2], slope)
    y = jnp.dot(w_ref[...], h.astype(_MXU_DTYPE),
                preferred_element_type=jnp.float32) + b_ref[...]
    y_ref[0] = y.astype(y_ref.dtype)
    st_ref[0] = jnp.concatenate(
        [jnp.sum(y, axis=1, keepdims=True),
         jnp.sum(y * y, axis=1, keepdims=True)], axis=1)


def affine_conv_stats(x, scale, shift, w, b, slope=0.01):
    B, Cin, N = x.shape
    Cout = w.shape[0]
    ss = jnp.stack([scale, shift], axis=1).astype(jnp.float32)   # (Cin, 2)
    return pl.pallas_call(
        functools.partial(_affine_conv_kernel, slope=slope),
        out_shape=(jax.ShapeDtypeStruct((B, Cout, N), _MXU_DTYPE),
                   jax.ShapeDtypeStruct((B, Cout, 2), jnp.float32)),
        grid=(B,),
        in_specs=[pl.BlockSpec((1, Cin, N), lambda i: (i, 0, 0)),
                  pl.BlockSpec((Cin, 2), lambda i: (0, 0)),
                  pl.BlockSpec((Cout, Cin), lambda i: (0, 0)),
                  pl.BlockSpec((Cout, 1), lambda i: (0, 0))],
        out_specs=(pl.BlockSpec((1, Cout, N), lambda i: (i, 0, 0)),
                   pl.BlockSpec((1, Cout, 2), lambda i: (i, 0, 0))),
        compiler_params=_P1,
    )(x, ss, w.astype(_MXU_DTYPE), b.reshape(Cout, 1).astype(jnp.float32))


# ----------------------------------------------------------------------------
# Kernel 4: final BN affine + LeakyReLU (both branches) fused with keypoint
#           scoring.  Similarity is streamed over N2 tiles with a running
#           row-max (s1) + per-tile col-max (s2); NO (N1,N2) buffer, no softmax.
#           Emits L2-NORMALIZED embeddings (normalization is gather-invariant).
# ----------------------------------------------------------------------------
def _finalize_keypoint_kernel(ys_ref, yt_ref, ps_ref, pt_ref,
                              es_ref, et_ref, s1_ref, s2_ref,
                              sn_scr, s1_scr, *, slope):
    k = pl.program_id(1)

    @pl.when(k == 0)
    def _():
        es = _leaky(ys_ref[0].astype(jnp.float32) * ps_ref[:, 0:1]
                    + ps_ref[:, 1:2], slope)                      # (C, N1)
        sn_scr[...] = _l2norm_cols(es).astype(_MXU_DTYPE)
        s1_scr[...] = jnp.full_like(s1_scr, -jnp.inf)

    et = _leaky(yt_ref[0].astype(jnp.float32) * pt_ref[:, 0:1]
                + pt_ref[:, 1:2], slope)                          # (C, TN2)
    tn = _l2norm_cols(et).astype(_MXU_DTYPE)
    et_ref[0] = tn
    s = jax.lax.dot_general(sn_scr[...], tn, (((0,), (0,)), ((), ())),
                            preferred_element_type=jnp.float32)   # (N1, TN2)
    s1_scr[...] = jnp.maximum(s1_scr[...], jnp.max(s, axis=1, keepdims=True))
    s2_ref[0] = jnp.max(s, axis=0, keepdims=True)                 # (1, TN2)

    @pl.when(k == pl.num_programs(1) - 1)
    def _():
        es_ref[0] = sn_scr[...]
        s1_ref[0] = s1_scr[...]


def finalize_and_score(ys, yt, sc_src, sh_src, sc_tgt, sh_tgt, slope=0.01):
    B, C, N1 = ys.shape
    N2 = yt.shape[2]
    tn2 = _pick_tile(N2)
    kt = N2 // tn2
    ps = jnp.stack([sc_src, sh_src], axis=1).astype(jnp.float32)   # (C, 2)
    pt = jnp.stack([sc_tgt, sh_tgt], axis=1).astype(jnp.float32)
    return pl.pallas_call(
        functools.partial(_finalize_keypoint_kernel, slope=slope),
        out_shape=(jax.ShapeDtypeStruct((B, C, N1), _MXU_DTYPE),
                   jax.ShapeDtypeStruct((B, C, N2), _MXU_DTYPE),
                   jax.ShapeDtypeStruct((B, N1, 1), jnp.float32),
                   jax.ShapeDtypeStruct((B, 1, N2), jnp.float32)),
        grid=(B, kt),
        in_specs=[pl.BlockSpec((1, C, N1), lambda b, k: (b, 0, 0)),
                  pl.BlockSpec((1, C, tn2), lambda b, k: (b, 0, k)),
                  pl.BlockSpec((C, 2), lambda b, k: (0, 0)),
                  pl.BlockSpec((C, 2), lambda b, k: (0, 0))],
        out_specs=(pl.BlockSpec((1, C, N1), lambda b, k: (b, 0, 0)),
                   pl.BlockSpec((1, C, tn2), lambda b, k: (b, 0, k)),
                   pl.BlockSpec((1, N1, 1), lambda b, k: (b, 0, 0)),
                   pl.BlockSpec((1, 1, tn2), lambda b, k: (b, 0, k))),
        scratch_shapes=[pltpu.VMEM((C, N1), _MXU_DTYPE),
                        pltpu.VMEM((N1, 1), jnp.float32)],
        compiler_params=_P2,
    )(ys, yt, ps, pt)


# ----------------------------------------------------------------------------
# Kernel 5: correspondence generation, flash over the tgt-keypoint axis.
#           Embeddings arrive already L2-normalized (bf16); point matmuls stay
#           f32 since they feed the SVD (R/t accuracy).
# ----------------------------------------------------------------------------
def _corr_kernel(se_ref, te_ref, sp_ref, tp_ref, sc_ref, tc_ref,
                 m_scr, l_scr, acc_scr):
    k = pl.program_id(1)

    @pl.when(k == 0)
    def _():
        m_scr[...] = jnp.full_like(m_scr, -jnp.inf)
        l_scr[...] = jnp.zeros_like(l_scr)
        acc_scr[...] = jnp.zeros_like(acc_scr)

    # TODO(synk): torch fills NaNs with random.random() on the un-normalized
    # embeddings; fixed 0.5 guard on the normalized ones is used here.
    se = jnp.where(jnp.isnan(se_ref[0]), 0.5, se_ref[0])           # (C, K1) bf16
    te = jnp.where(jnp.isnan(te_ref[0]), 0.5, te_ref[0])           # (C, TK2) bf16
    sp = sp_ref[0]                                                 # (3, K1) f32
    tp = tp_ref[0]                                                 # (3, TK2) f32

    s = jax.lax.dot_general(te, se, (((0,), (0,)), ((), ())),
                            preferred_element_type=jnp.float32)    # (TK2, K1)

    # online softmax over tgt keypoints (K2)  ->  src_corr accumulator
    m_new = jnp.maximum(m_scr[...], jnp.max(s, axis=0, keepdims=True))
    a = jnp.exp(m_scr[...] - m_new)
    p = jnp.exp(s - m_new)                                          # (TK2, K1)
    l_scr[...] = a * l_scr[...] + jnp.sum(p, axis=0, keepdims=True)
    acc_scr[...] = a * acc_scr[...] + jnp.dot(tp, p,
                                              preferred_element_type=jnp.float32)
    m_scr[...] = m_new

    # softmax over src keypoints (K1) is complete within this tile.
    s_max = jnp.max(s, axis=1, keepdims=True)
    e = jnp.exp(s - s_max)
    soft0 = e / jnp.sum(e, axis=1, keepdims=True)                   # exact divide
    tc_ref[0] = jax.lax.dot_general(sp, soft0, (((1,), (1,)), ((), ())),
                                    preferred_element_type=jnp.float32)

    @pl.when(k == pl.num_programs(1) - 1)
    def _():
        sc_ref[0] = acc_scr[...] / l_scr[...]                       # exact divide


def generate_corr(src_pts_cf, tgt_pts_cf, src_emb_n, tgt_emb_n):
    B, C, K1 = src_emb_n.shape
    K2 = tgt_emb_n.shape[2]
    tk2 = _pick_tile(K2)
    kt = K2 // tk2
    return pl.pallas_call(
        _corr_kernel,
        out_shape=(jax.ShapeDtypeStruct((B, 3, K1), jnp.float32),
                   jax.ShapeDtypeStruct((B, 3, K2), jnp.float32)),
        grid=(B, kt),
        in_specs=[pl.BlockSpec((1, C, K1), lambda b, k: (b, 0, 0)),
                  pl.BlockSpec((1, C, tk2), lambda b, k: (b, 0, k)),
                  pl.BlockSpec((1, 3, K1), lambda b, k: (b, 0, 0)),
                  pl.BlockSpec((1, 3, tk2), lambda b, k: (b, 0, k))],
        out_specs=(pl.BlockSpec((1, 3, K1), lambda b, k: (b, 0, 0)),
                   pl.BlockSpec((1, 3, tk2), lambda b, k: (b, 0, k))),
        scratch_shapes=[pltpu.VMEM((1, K1), jnp.float32),
                        pltpu.VMEM((1, K1), jnp.float32),
                        pltpu.VMEM((3, K1), jnp.float32)],
        compiler_params=_P2,
    )(src_emb_n, tgt_emb_n, src_pts_cf, tgt_pts_cf)


# ----------------------------------------------------------------------------
# Kernel 6: SVD preparation (centering + 3x3 cross-covariance H)
# ----------------------------------------------------------------------------
def _svd_prep_kernel(s_ref, c_ref, h_ref, sm_ref, cm_ref):
    s = s_ref[0]                                   # (3, Nk)
    c = c_ref[0]                                   # (3, Nk)
    sm = jnp.mean(s, axis=1, keepdims=True)
    cm = jnp.mean(c, axis=1, keepdims=True)
    sc = s - sm
    cc = c - cm
    h_ref[0] = jax.lax.dot_general(sc, cc, (((1,), (1,)), ((), ())),
                                   preferred_element_type=jnp.float32)
    sm_ref[0] = sm
    cm_ref[0] = cm


def svd_head(src, src_corr):
    B, _, Nk = src.shape
    H, sm, cm = pl.pallas_call(
        _svd_prep_kernel,
        out_shape=(jax.ShapeDtypeStruct((B, 3, 3), jnp.float32),
                   jax.ShapeDtypeStruct((B, 3, 1), jnp.float32),
                   jax.ShapeDtypeStruct((B, 3, 1), jnp.float32)),
        grid=(B,),
        in_specs=[pl.BlockSpec((1, 3, Nk), lambda i: (i, 0, 0)),
                  pl.BlockSpec((1, 3, Nk), lambda i: (i, 0, 0))],
        out_specs=(pl.BlockSpec((1, 3, 3), lambda i: (i, 0, 0)),
                   pl.BlockSpec((1, 3, 1), lambda i: (i, 0, 0)),
                   pl.BlockSpec((1, 3, 1), lambda i: (i, 0, 0))),
        compiler_params=_P1,
    )(src, src_corr)
    # TODO(synk): per-batch 3x3 torch.svd/det has no Pallas equivalent; done with
    # jnp.linalg outside the kernel (the O(N) centering/covariance is in-kernel).
    u, _, vh = jnp.linalg.svd(H)
    v = jnp.swapaxes(vh, -1, -2)
    ut = jnp.swapaxes(u, -1, -2)
    det = jnp.linalg.det(jnp.matmul(v, ut))
    d = jnp.stack([jnp.ones_like(det), jnp.ones_like(det), det], axis=-1)  # (B,3)
    R = jnp.matmul(v * d[:, None, :], ut)
    t = (jnp.matmul(-R, sm) + cm)[:, :, 0]
    return R, t


# ----------------------------------------------------------------------------
# Parameters (deterministic synthetic init)
# ----------------------------------------------------------------------------
def init_params(key, emb_dims=64):
    C1 = emb_dims // 2

    def nrm(k, shape, scale=0.1):
        return scale * jax.random.normal(k, shape, dtype=jnp.float32)

    keys = jax.random.split(key, 16)
    p = {}
    # TODO(synk): DGCNN (emb_nn1) definition is not in the provided source; a
    # deterministic pointwise Conv1d(3->C1) -> LeakyReLU(0.2) -> Conv1d(C1->C1)
    # stack with the same output shape (B, C1, N) stands in for it.
    p['e1_w1'] = nrm(keys[0], (C1, 3)); p['e1_b1'] = nrm(keys[1], (C1,))
    p['e1_w2'] = nrm(keys[2], (C1, C1)); p['e1_b2'] = nrm(keys[3], (C1,))
    for name, off in (('src', 4), ('tgt', 8)):
        p[f'{name}_w1'] = nrm(keys[off + 0], (2 * C1, 4 * C1))
        p[f'{name}_b1'] = nrm(keys[off + 1], (2 * C1,))
        p[f'{name}_w2'] = nrm(keys[off + 2], (emb_dims, 2 * C1))
        p[f'{name}_b2'] = nrm(keys[off + 3], (emb_dims,))
        p[f'{name}_g1'] = jnp.ones((2 * C1,), jnp.float32)
        p[f'{name}_be1'] = jnp.zeros((2 * C1,), jnp.float32)
        p[f'{name}_g2'] = jnp.ones((emb_dims,), jnp.float32)
        p[f'{name}_be2'] = jnp.zeros((emb_dims,), jnp.float32)
    return p


# ----------------------------------------------------------------------------
# RegNet forward
# ----------------------------------------------------------------------------
def regnet_forward(params, src, tgt, emb_dims=64):
    B, _, N1 = src.shape
    N2 = tgt.shape[2]

    # emb_nn1 (shared weights): src and tgt through one fused pallas_call
    x_all = jnp.concatenate([src, tgt], axis=0)                 # (2B, 3, N)
    emb_all = emb_nn1_forward(x_all, params['e1_w1'], params['e1_b1'],
                              params['e1_w2'], params['e1_b2'], slope=0.2)
    src_emb, tgt_emb = emb_all[:B], emb_all[B:]

    # feature_interaction (flash over N2) fused with Conv1d #1 (+ BN stats)
    y1s, st1s = inter_conv_stats(src_emb, tgt_emb, params['src_w1'], params['src_b1'])
    y1t, st1t = inter_conv_stats(tgt_emb, src_emb, params['tgt_w1'], params['tgt_b1'])
    sc1s, sh1s = bn_scale_shift(st1s, params['src_g1'], params['src_be1'], B * N1)
    sc1t, sh1t = bn_scale_shift(st1t, params['tgt_g1'], params['tgt_be1'], B * N2)

    # BN1 affine + LeakyReLU fused with Conv1d #2 (+ BN2 stats)
    y2s, st2s = affine_conv_stats(y1s, sc1s, sh1s, params['src_w2'], params['src_b2'])
    y2t, st2t = affine_conv_stats(y1t, sc1t, sh1t, params['tgt_w2'], params['tgt_b2'])
    sc2s, sh2s = bn_scale_shift(st2s, params['src_g2'], params['src_be2'], B * N1)
    sc2t, sh2t = bn_scale_shift(st2t, params['tgt_g2'], params['tgt_be2'], B * N2)

    # BN2 affine + LeakyReLU fused with keypoint scoring (streamed over N2);
    # emits L2-normalized embeddings so the corr kernel skips re-normalization.
    emb2s, emb2t, s1, s2 = finalize_and_score(y2s, y2t, sc2s, sh2s, sc2t, sh2t)

    # top-k + gather in XLA (lane gathers, channel-first — no transposes needed)
    # NOTE: torch.topk(sorted=False) ordering differs, but downstream pairing is
    # index-consistent so R/t match.
    k1, k2 = int(N1 * 0.9), int(N2 * 0.9)
    _, idx1 = jax.lax.top_k(s1[:, :, 0], k1)
    _, idx2 = jax.lax.top_k(s2[:, 0, :], k2)
    src_k = jnp.take_along_axis(src, idx1[:, None, :], axis=2)          # (B, 3, k1)
    tgt_k = jnp.take_along_axis(tgt, idx2[:, None, :], axis=2)          # (B, 3, k2)
    src_emb_k = jnp.take_along_axis(emb2s, idx1[:, None, :], axis=2)    # (B, C, k1)
    tgt_emb_k = jnp.take_along_axis(emb2t, idx2[:, None, :], axis=2)    # (B, C, k2)

    # correspondences (flash over k2), then SVD head
    src_corr, _tgt_corr = generate_corr(src_k, tgt_k, src_emb_k, tgt_emb_k)
    R1, t1 = svd_head(src_k, src_corr)
    return R1, t1, src_k, src_corr


if __name__ == "__main__":
    key = jax.random.PRNGKey(0)
    k_src, k_tgt, k_par = jax.random.split(key, 3)
    B, N, EMB = 2, 16, 64
    src = jax.random.normal(k_src, (B, 3, N), dtype=jnp.float32)
    tgt = jax.random.normal(k_tgt, (B, 3, N), dtype=jnp.float32)
    params = init_params(k_par, emb_dims=EMB)

    R1, t1, src_k, src_corr = regnet_forward(params, src, tgt, emb_dims=EMB)
    jax.block_until_ready((R1, t1, src_k, src_corr))

    assert R1.shape == (B, 3, 3) and t1.shape == (B, 3)
    assert src_k.shape == (B, 3, int(N * 0.9))
    assert src_corr.shape == (B, 3, int(N * 0.9))
    assert not bool(jnp.any(jnp.isnan(R1))) and not bool(jnp.any(jnp.isnan(t1)))
    print("KERNEL_OK")
</pallas_src>

<mosaic_0001>
module attributes {stable_mosaic.version = 11 : i64} {
  func.func @_emb_nn1_kernel(%arg0: i32, %arg1: memref<1x3x16xf32, #tpu.memory_space<vmem>>, %arg2: memref<32x3xf32, #tpu.memory_space<vmem>>, %arg3: memref<32x1xf32, #tpu.memory_space<vmem>>, %arg4: memref<32x32xbf16, #tpu.memory_space<vmem>>, %arg5: memref<32x1xf32, #tpu.memory_space<vmem>>, %arg6: memref<1x32x16xbf16, #tpu.memory_space<vmem>>) attributes {dimension_semantics = [#tpu.dimension_semantics<parallel>], iteration_bounds = array<i64: 4>, scalar_prefetch = 0 : i64, scratch_operands = 0 : i64, tpu.core_type = #tpu.core_type<tc>, window_params = [{transform_indices = @transform_0, window_bounds = array<i64: 1, 3, 16>}, {pipeline_mode = #tpu.pipeline_mode<synchronous>, transform_indices = @transform_1, window_bounds = array<i64: 32, 3>}, {pipeline_mode = #tpu.pipeline_mode<synchronous>, transform_indices = @transform_2, window_bounds = array<i64: 32, 1>}, {pipeline_mode = #tpu.pipeline_mode<synchronous>, transform_indices = @transform_3, window_bounds = array<i64: 32, 32>}, {pipeline_mode = #tpu.pipeline_mode<synchronous>, transform_indices = @transform_4, window_bounds = array<i64: 32, 1>}, {transform_indices = @transform_5, window_bounds = array<i64: 1, 32, 16>}]} {
    %c0 = arith.constant 0 : index
    %c0_0 = arith.constant 0 : index
    %c0_1 = arith.constant 0 : index
    %0 = vector.load %arg1[%c0, %c0_0, %c0_1] : memref<1x3x16xf32, #tpu.memory_space<vmem>>, vector<1x3x16xf32>
    %1 = vector.shape_cast %0 : vector<1x3x16xf32> to vector<3x16xf32>
    %c0_2 = arith.constant 0 : index
    %c0_3 = arith.constant 0 : index
    %2 = vector.load %arg2[%c0_2, %c0_3] : memref<32x3xf32, #tpu.memory_space<vmem>>, vector<32x3xf32>
    %3 = vector.extract_strided_slice %2 {offsets = [0, 0], sizes = [32, 1], strides = [1, 1]} : vector<32x3xf32> to vector<32x1xf32>
    %4 = vector.extract_strided_slice %1 {offsets = [0, 0], sizes = [1, 16], strides = [1, 1]} : vector<3x16xf32> to vector<1x16xf32>
    %5 = vector.broadcast %3 : vector<32x1xf32> to vector<32x16xf32>
    %6 = vector.broadcast %4 : vector<1x16xf32> to vector<32x16xf32>
    %7 = arith.mulf %5, %6 : vector<32x16xf32>
    %8 = vector.extract_strided_slice %2 {offsets = [0, 1], sizes = [32, 1], strides = [1, 1]} : vector<32x3xf32> to vector<32x1xf32>
    %9 = vector.extract_strided_slice %1 {offsets = [1, 0], sizes = [1, 16], strides = [1, 1]} : vector<3x16xf32> to vector<1x16xf32>
    %10 = vector.broadcast %8 : vector<32x1xf32> to vector<32x16xf32>
    %11 = vector.broadcast %9 : vector<1x16xf32> to vector<32x16xf32>
    %12 = arith.mulf %10, %11 : vector<32x16xf32>
    %13 = arith.addf %7, %12 : vector<32x16xf32>
    %14 = vector.extract_strided_slice %2 {offsets = [0, 2], sizes = [32, 1], strides = [1, 1]} : vector<32x3xf32> to vector<32x1xf32>
    %15 = vector.extract_strided_slice %1 {offsets = [2, 0], sizes = [1, 16], strides = [1, 1]} : vector<3x16xf32> to vector<1x16xf32>
    %16 = vector.broadcast %14 : vector<32x1xf32> to vector<32x16xf32>
    %17 = vector.broadcast %15 : vector<1x16xf32> to vector<32x16xf32>
    %18 = arith.mulf %16, %17 : vector<32x16xf32>
    %19 = arith.addf %13, %18 : vector<32x16xf32>
    %c0_4 = arith.constant 0 : index
    %c0_5 = arith.constant 0 : index
    %20 = vector.load %arg3[%c0_4, %c0_5] : memref<32x1xf32, #tpu.memory_space<vmem>>, vector<32x1xf32>
    %21 = vector.broadcast %20 : vector<32x1xf32> to vector<32x16xf32>
    %22 = arith.addf %19, %21 : vector<32x16xf32>
    %cst = arith.constant 0.000000e+00 : f32
    %23 = vector.broadcast %cst : f32 to vector<32x16xf32>
    %24 = arith.cmpf oge, %22, %23 : vector<32x16xf32>
    %cst_6 = arith.constant 2.000000e-01 : f32
    %25 = vector.broadcast %cst_6 : f32 to vector<32x16xf32>
    %26 = arith.mulf %25, %22 : vector<32x16xf32>
    %27 = arith.select %24, %22, %26 : vector<32x16xi1>, vector<32x16xf32>
    %c0_7 = arith.constant 0 : index
    %c0_8 = arith.constant 0 : index
    %28 = vector.load %arg4[%c0_7, %c0_8] : memref<32x32xbf16, #tpu.memory_space<vmem>>, vector<32x32xbf16>
    %29 = arith.truncf %27 : vector<32x16xf32> to vector<32x16xbf16>
    %cst_9 = arith.constant dense<0.000000e+00> : vector<32x16xf32>
    %30 = tpu.matmul %28, %29, %cst_9 {dimension_numbers = #tpu.dot_dimension_numbers<[1], [0], [0], [1], [0, 0, 1, 1], [], []>} : vector<32x32xbf16>, vector<32x16xbf16>, vector<32x16xf32> -> vector<32x16xf32>
    %c0_10 = arith.constant 0 : index
    %c0_11 = arith.constant 0 : index
    %31 = vector.load %arg5[%c0_10, %c0_11] : memref<32x1xf32, #tpu.memory_space<vmem>>, vector<32x1xf32>
    %32 = vector.broadcast %31 : vector<32x1xf32> to vector<32x16xf32>
    %33 = arith.addf %30, %32 : vector<32x16xf32>
    %34 = arith.truncf %33 : vector<32x16xf32> to vector<32x16xbf16>
    %c0_12 = arith.constant 0 : index
    %c0_13 = arith.constant 0 : index
    %c0_14 = arith.constant 0 : index
    %35 = vector.load %arg6[%c0_12, %c0_13, %c0_14] : memref<1x32x16xbf16, #tpu.memory_space<vmem>>, vector<1x32x16xbf16>
    %36 = vector.shape_cast %35 : vector<1x32x16xbf16> to vector<32x16xbf16>
    %37 = vector.shape_cast %34 : vector<32x16xbf16> to vector<1x32x16xbf16>
    tpu.vector_store %arg6[%c0_12, %c0_13, %c0_14], %37 {strides = array<i32>} : memref<1x32x16xbf16, #tpu.memory_space<vmem>>, vector<1x32x16xbf16>,
    return
  }
  func.func @transform_0(%arg0: i32) -> (i32, i32, i32) {
    %c0_i32 = arith.constant 0 : i32
    %c0_i32_0 = arith.constant 0 : i32
    %c0_i32_1 = arith.constant 0 : i32
    return %arg0, %c0_i32, %c0_i32_0 : i32, i32, i32
  }
  func.func @transform_1(%arg0: i32) -> (i32, i32) {
    %c0_i32 = arith.constant 0 : i32
    %c0_i32_0 = arith.constant 0 : i32
    %c0_i32_1 = arith.constant 0 : i32
    return %c0_i32, %c0_i32_0 : i32, i32
  }
  func.func @transform_2(%arg0: i32) -> (i32, i32) {
    %c0_i32 = arith.constant 0 : i32
    %c0_i32_0 = arith.constant 0 : i32
    %c0_i32_1 = arith.constant 0 : i32
    return %c0_i32, %c0_i32_0 : i32, i32
  }
  func.func @transform_3(%arg0: i32) -> (i32, i32) {
    %c0_i32 = arith.constant 0 : i32
    %c0_i32_0 = arith.constant 0 : i32
    %c0_i32_1 = arith.constant 0 : i32
    return %c0_i32, %c0_i32_0 : i32, i32
  }
  func.func @transform_4(%arg0: i32) -> (i32, i32) {
    %c0_i32 = arith.constant 0 : i32
    %c0_i32_0 = arith.constant 0 : i32
    %c0_i32_1 = arith.constant 0 : i32
    return %c0_i32, %c0_i32_0 : i32, i32
  }
  func.func @transform_5(%arg0: i32) -> (i32, i32, i32) {
    %c0_i32 = arith.constant 0 : i32
    %c0_i32_0 = arith.constant 0 : i32
    %c0_i32_1 = arith.constant 0 : i32
    return %arg0, %c0_i32, %c0_i32_0 : i32, i32, i32
  }
}

</mosaic_0001>

<llo_original>
// kernel: tpu_custom_call.1
$region0: #{tpu_custom_call.1}
  #allocation0 [shape = 'u32[]', space=smem, size = 0x4, offset = 0x4, fixed_abs, tag = 'smem constant byte address 0x4 - core index']
  #allocation1 [shape = 'u32[72,128]{1,0:T(1,128)}', space=vmem, size = 0x9000, scoped, tag = 'internal scratch']
  %s0 = inlined_call_operand.vmem [shape: f32[4,3,16], index: 0, kind: input, shape index: {}]
  %s1 = inlined_call_operand.vmem [shape: f32[32,3], index: 1, kind: input, shape index: {}]
  %s2 = inlined_call_operand.vmem [shape: f32[32,1], index: 2, kind: input, shape index: {}]
  %s3 = inlined_call_operand.vmem [shape: bf16[32,32], index: 3, kind: input, shape index: {}]
  %s4 = inlined_call_operand.vmem [shape: f32[32,1], index: 4, kind: input, shape index: {}]
  %s5 = inlined_call_operand.vmem [shape: bf16[4,32,16], index: 5, kind: output, shape index: {}]
  %s6 = sld [smem:[#allocation0]]
  $region53: #{tpu_custom_call.1} parent=0
    _
  %s8 = ssub.s32 1, %s6
  %s9 = scalar_select 0, %s8, %s6
  loop: start=0, step=1, limit=6
  $region2: #{tpu_custom_call.1} parent=0 // loop_pre_header
    _
  $region3: #{tpu_custom_call.1} parent=0 // loop_header
    %s11 = sphi 0, %s15
    %p12 = scmp.ge.s32.totalorder %s11, 6
    %s21 = sphi 0, %s23
    %s24 = sphi 0, %s21
    %s25 = sphi 0, %s24
    %s41 = sphi 0, %s25
    %s45 = sphi 0, %s45
    %s47 = sphi 0, %s45
    %s48 = sphi 0, %s47
    %s62 = sphi 0, %s48
    %s66 = sphi 0, %s66
    %s68 = sphi 0, %s66
    %s69 = sphi 0, %s68
    %s83 = sphi 0, %s69
    %s87 = sphi 0, %s87
    %s89 = sphi 0, %s87
    %s90 = sphi 0, %s89
    %s104 = sphi 0, %s90
    %s108 = sphi 0, %s108
    %s110 = sphi 0, %s108
    %s111 = sphi 0, %s110
    %s125 = sphi 0, %s111
    %s131 = sphi 0, %s133
    %s134 = sphi 0, %s131
    %s135 = sphi 0, %s134
    %s151 = sphi 0, %s135
  $region4: #{tpu_custom_call.1} parent=0 // loop_header_branch
    %14 = sbr.rel (%p12) target = $region8
  $region5: #{tpu_custom_call.1} parent=0 // loop_body
    %s16 = ssub.s32 %s11, 1
    %s17 = ssub.s32 %s11, 2
    %s18 = sadd.s32 %s11, 1
    %s19 = ssub.s32 %s11, %s18
    %p20 = scmp.eq.s32.totalorder %s19, 0
    %s22 = sadd.s32 %s21, 1
    %s23 = scalar_select %p20, %s21, %s22
    %p26 = pneg %p20
    %p27 = scmp.eq.s32.totalorder %s11, 3
    %p28 = por %p26, %p27
    %p29 = scmp.ne.s32.totalorder %s21, %s24
    %p30 = scmp.eq.s32.totalorder %s11, 0
    %p31 = por %p29, %p30
    %p32 = scmp.ne.s32.totalorder %s21, %s24
    %p33 = scmp.eq.s32.totalorder %s16, 3
    %p34 = por %p32, %p33
    %p35 = scmp.ne.s32.totalorder %s24, %s25
    %p36 = scmp.eq.s32.totalorder %s16, 0
    %p37 = por %p35, %p36
    %p38 = scmp.ne.s32.totalorder %s24, %s25
    %p39 = scmp.eq.s32.totalorder %s17, 3
    %p40 = por %p38, %p39
    %p42 = scmp.ne.s32.totalorder %s25, %s41
    %p43 = scmp.eq.s32.totalorder %s17, 0
    %p44 = por %p42, %p43
    %s46 = sadd.s32 %s45, 1
    %p49 = scmp.eq.s32.totalorder %s11, 3
    %p50 = scmp.ne.s32.totalorder %s45, %s47
    %p51 = scmp.eq.s32.totalorder %s11, 0
    %p52 = por %p50, %p51
    %p53 = scmp.ne.s32.totalorder %s45, %s47
    %p54 = scmp.eq.s32.totalorder %s16, 3
    %p55 = por %p53, %p54
    %p56 = scmp.ne.s32.totalorder %s47, %s48
    %p57 = scmp.eq.s32.totalorder %s16, 0
    %p58 = por %p56, %p57
    %p59 = scmp.ne.s32.totalorder %s47, %s48
    %p60 = scmp.eq.s32.totalorder %s17, 3
    %p61 = por %p59, %p60
    %p63 = scmp.ne.s32.totalorder %s48, %s62
    %p64 = scmp.eq.s32.totalorder %s17, 0
    %p65 = por %p63, %p64
    %s67 = sadd.s32 %s66, 1
    %p70 = scmp.eq.s32.totalorder %s11, 3
    %p71 = scmp.ne.s32.totalorder %s66, %s68
    %p72 = scmp.eq.s32.totalorder %s11, 0
    %p73 = por %p71, %p72
    %p74 = scmp.ne.s32.totalorder %s66, %s68
    %p75 = scmp.eq.s32.totalorder %s16, 3
    %p76 = por %p74, %p75
    %p77 = scmp.ne.s32.totalorder %s68, %s69
    %p78 = scmp.eq.s32.totalorder %s16, 0
    %p79 = por %p77, %p78
    %p80 = scmp.ne.s32.totalorder %s68, %s69
    %p81 = scmp.eq.s32.totalorder %s17, 3
    %p82 = por %p80, %p81
    %p84 = scmp.ne.s32.totalorder %s69, %s83
    %p85 = scmp.eq.s32.totalorder %s17, 0
    %p86 = por %p84, %p85
    %s88 = sadd.s32 %s87, 1
    %p91 = scmp.eq.s32.totalorder %s11, 3
    %p92 = scmp.ne.s32.totalorder %s87, %s89
    %p93 = scmp.eq.s32.totalorder %s11, 0
    %p94 = por %p92, %p93
    %p95 = scmp.ne.s32.totalorder %s87, %s89
    %p96 = scmp.eq.s32.totalorder %s16, 3
    %p97 = por %p95, %p96
    %p98 = scmp.ne.s32.totalorder %s89, %s90
    %p99 = scmp.eq.s32.totalorder %s16, 0
    %p100 = por %p98, %p99
    %p101 = scmp.ne.s32.totalorder %s89, %s90
    %p102 = scmp.eq.s32.totalorder %s17, 3
    %p103 = por %p101, %p102
    %p105 = scmp.ne.s32.totalorder %s90, %s104
    %p106 = scmp.eq.s32.totalorder %s17, 0
    %p107 = por %p105, %p106
    %s109 = sadd.s32 %s108, 1
    %p112 = scmp.eq.s32.totalorder %s11, 3
    %p113 = scmp.ne.s32.totalorder %s108, %s110
    %p114 = scmp.eq.s32.totalorder %s11, 0
    %p115 = por %p113, %p114
    %p116 = scmp.ne.s32.totalorder %s108, %s110
    %p117 = scmp.eq.s32.totalorder %s16, 3
    %p118 = por %p116, %p117
    %p119 = scmp.ne.s32.totalorder %s110, %s111
    %p120 = scmp.eq.s32.totalorder %s16, 0
    %p121 = por %p119, %p120
    %p122 = scmp.ne.s32.totalorder %s110, %s111
    %p123 = scmp.eq.s32.totalorder %s17, 3
    %p124 = por %p122, %p123
    %p126 = scmp.ne.s32.totalorder %s111, %s125
    %p127 = scmp.eq.s32.totalorder %s17, 0
    %p128 = por %p126, %p127
    %s129 = ssub.s32 %s11, %s18
    %p130 = scmp.eq.s32.totalorder %s129, 0
    %s132 = sadd.s32 %s131, 1
    %s133 = scalar_select %p130, %s131, %s132
    %p136 = pneg %p130
    %p137 = scmp.eq.s32.totalorder %s11, 3
    %p138 = por %p136, %p137
    %p139 = scmp.ne.s32.totalorder %s131, %s134
    %p140 = scmp.eq.s32.totalorder %s11, 0
    %p141 = por %p139, %p140
    %p142 = scmp.ne.s32.totalorder %s131, %s134
    %p143 = scmp.eq.s32.totalorder %s16, 3
    %p144 = por %p142, %p143
    %p145 = scmp.ne.s32.totalorder %s134, %s135
    %p146 = scmp.eq.s32.totalorder %s16, 0
    %p147 = por %p145, %p146
    %p148 = scmp.ne.s32.totalorder %s134, %s135
    %p149 = scmp.eq.s32.totalorder %s17, 3
    %p150 = por %p148, %p149
    %p152 = scmp.ne.s32.totalorder %s135, %s151
    %p153 = scmp.eq.s32.totalorder %s17, 0
    %p154 = por %p152, %p153
    %p155 = scmp.le.s32.totalorder 1, %s11
    %p156 = scmp.lt.s32.totalorder %s11, 5
    %p157 = pnand %p155, %p156
    %p158 = pneg %p157
    // Predicated region
    $region9: #{tpu_custom_call.1} parent=5 // pred_check
      _
    $region10: #{tpu_custom_call.1} parent=5 // pred_check_branch
      %160 = sbr.rel (%p157) target = $region12
    $region11: #{tpu_custom_call.1} parent=5 // pred_region
      %s161 = ssub.s32 %s11, 1
      // Predicated region
      $region13: #{tpu_custom_call.1} parent=11 // pred_check
        %p162 = pneg %p58
      $region14: #{tpu_custom_call.1} parent=11 // pred_check_branch
        %164 = sbr.rel (%p162) target = $region16
      $region15: #{tpu_custom_call.1} parent=11 // pred_region
        _
      $region16: #{tpu_custom_call.1} parent=11 // pred_fallthru
        _
      // Predicated region
      $region17: #{tpu_custom_call.1} parent=11 // pred_check
        %p165 = pneg %p79
      $region18: #{tpu_custom_call.1} parent=11 // pred_check_branch
        %167 = sbr.rel (%p165) target = $region20
      $region19: #{tpu_custom_call.1} parent=11 // pred_region
        _
      $region20: #{tpu_custom_call.1} parent=11 // pred_fallthru
        _
      // Predicated region
      $region21: #{tpu_custom_call.1} parent=11 // pred_check
        %p168 = pneg %p100
      $region22: #{tpu_custom_call.1} parent=11 // pred_check_branch
        %170 = sbr.rel (%p168) target = $region24
      $region23: #{tpu_custom_call.1} parent=11 // pred_region
        _
      $region24: #{tpu_custom_call.1} parent=11 // pred_fallthru
        _
      // Predicated region
      $region25: #{tpu_custom_call.1} parent=11 // pred_check
        %p171 = pneg %p121
      $region26: #{tpu_custom_call.1} parent=11 // pred_check_branch
        %173 = sbr.rel (%p171) target = $region28
      $region27: #{tpu_custom_call.1} parent=11 // pred_region
        _
      $region28: #{tpu_custom_call.1} parent=11 // pred_fallthru
        _
    $region12: #{tpu_custom_call.1} parent=5 // pred_fallthru
      _
    %p174 = scmp.lt.s32.totalorder %s11, 4
    // Predicated region
    $region29: #{tpu_custom_call.1} parent=5 // pred_check
      %p175 = pneg %p174
    $region30: #{tpu_custom_call.1} parent=5 // pred_check_branch
      %177 = sbr.rel (%p175) target = $region32
    $region31: #{tpu_custom_call.1} parent=5 // pred_region
      // Predicated region
      $region33: #{tpu_custom_call.1} parent=31 // pred_check
        %p178 = pneg %p31
      $region34: #{tpu_custom_call.1} parent=31 // pred_check_branch
        %180 = sbr.rel (%p178) target = $region36
      $region35: #{tpu_custom_call.1} parent=31 // pred_region
        %p181 = scmp.lt.s32.totalorder %s11, 3
        %s182 = scalar_select %p181, %s11, 3
        %s183 = smul.addr %s182, 4
        %s184 = scalar_lea.vmem %s0, %s183
      $region36: #{tpu_custom_call.1} parent=31 // pred_fallthru
        _
    $region32: #{tpu_custom_call.1} parent=5 // pred_fallthru
      _
    %p185 = scmp.le.s32.totalorder 1, %s11
    %p186 = scmp.lt.s32.totalorder %s11, 5
    %p187 = pnand %p185, %p186
    %p188 = pneg %p187
    // Predicated region
    $region37: #{tpu_custom_call.1} parent=5 // pred_check
      _
    $region38: #{tpu_custom_call.1} parent=5 // pred_check_branch
      %190 = sbr.rel (%p187) target = $region40
    $region39: #{tpu_custom_call.1} parent=5 // pred_region
      %s191 = ssub.s32 %s11, 1
      %p192 = scmp.lt.s32.totalorder %s16, 3
      %s193 = scalar_select %p192, %s16, 3
      %s194 = smul.addr %s193, 4
      %s195 = scalar_lea.vmem %s0, %s194
      %p196 = pneg %p37
      %p197 = pneg %p34
      %p198 = pneg %p58
      %p199 = pneg %p55
      %p200 = pneg %p79
      %p201 = pneg %p76
      %p202 = pneg %p100
      %p203 = pneg %p97
      %p204 = pneg %p121
      %p205 = pneg %p118
      %p206 = pneg %p147
      %p207 = pneg %p144
      %p208 = scmp.lt.s32.totalorder %s16, 3
      %s209 = scalar_select %p208, %s16, 3
      %s210 = smul.addr %s209, 4
      %s211 = smul.addr %s210, 4
      %s212 = scalar_lea.vmem %s5, %s211
      %p213 = scmp.lt.s32.totalorder %s16, 3
      %s214 = scalar_select %p213, %s16, 3
      %s215 = smul.addr %s214, 4
      %s216 = scalar_lea.vmem %s0, %s215
      %p217 = scmp.lt.s32.totalorder %s16, 3
      %s218 = scalar_select %p217, %s16, 3
      %s219 = smul.addr %s218, 4
      %s220 = smul.addr %s219, 4
      %s221 = scalar_lea.vmem %s5, %s220
      %v223 = vld [vmem:[%s216] sm:$0x7]
      %v224 = vld [vmem:[%s1] sm:$0xff]
      %v225 = vld [vmem:[%s1 + $0x8] sm:$0xff]
      %v226 = vld [vmem:[%s1 + $0x10] sm:$0xff]
      %v227 = vld [vmem:[%s1 + $0x18] sm:$0xff]
      %229 = vset.pattern.permute.xlu0 0
      %230 = vperm.xlu0 %229, %v224
      %v231 = vpop.permute.xlu0 %230
      %234 = vset.pattern.permute.xlu0 0
      %235 = vperm.xlu0 %234, %v225
      %v236 = vpop.permute.xlu0 %235
      %239 = vset.pattern.permute.xlu0 0
      %240 = vperm.xlu0 %239, %v226
      %v241 = vpop.permute.xlu0 %240
      %244 = vset.pattern.permute.xlu0 0
      %245 = vperm.xlu0 %244, %v227
      %v246 = vpop.permute.xlu0 %245
      %v248 = vperm.slane %v223, 0
      %v249 = vmul.f32 %v231, %v248
      %v250 = vmul.f32 %v236, %v248
      %v251 = vmul.f32 %v241, %v248
      %v252 = vmul.f32 %v246, %v248
      %253 = vset.pattern.permute.xlu0 1
      %254 = vperm.xlu0 %253, %v224
      %v255 = vpop.permute.xlu0 %254
      %257 = vset.pattern.permute.xlu0 1
      %258 = vperm.xlu0 %257, %v225
      %v259 = vpop.permute.xlu0 %258
      %261 = vset.pattern.permute.xlu0 1
      %262 = vperm.xlu0 %261, %v226
      %v263 = vpop.permute.xlu0 %262
      %265 = vset.pattern.permute.xlu0 1
      %266 = vperm.xlu0 %265, %v227
      %v267 = vpop.permute.xlu0 %266
      %v269 = vperm.slane %v223, 1
      %v270 = vmul.f32 %v255, %v269
      %v271 = vmul.f32 %v259, %v269
      %v272 = vmul.f32 %v263, %v269
      %v273 = vmul.f32 %v267, %v269
      %v274 = vadd.f32 %v249, %v270
      %v275 = vadd.f32 %v250, %v271
      %v276 = vadd.f32 %v251, %v272
      %v277 = vadd.f32 %v252, %v273
      %278 = vset.pattern.permute.xlu0 2
      %279 = vperm.xlu0 %278, %v224
      %v280 = vpop.permute.xlu0 %279
      %282 = vset.pattern.permute.xlu0 2
      %283 = vperm.xlu0 %282, %v225
      %v284 = vpop.permute.xlu0 %283
      %286 = vset.pattern.permute.xlu0 2
      %287 = vperm.xlu0 %286, %v226
      %v288 = vpop.permute.xlu0 %287
      %290 = vset.pattern.permute.xlu0 2
      %291 = vperm.xlu0 %290, %v227
      %v292 = vpop.permute.xlu0 %291
      %v294 = vperm.slane %v223, 2
      %v295 = vmul.f32 %v280, %v294
      %v296 = vmul.f32 %v284, %v294
      %v297 = vmul.f32 %v288, %v294
      %v298 = vmul.f32 %v292, %v294
      %v299 = vadd.f32 %v274, %v295
      %v300 = vadd.f32 %v275, %v296
      %v301 = vadd.f32 %v276, %v297
      %v302 = vadd.f32 %v277, %v298
      %v303 = vld [vmem:[%s2] sm:$0xff]
      %v304 = vld [vmem:[%s2 + $0x8] sm:$0xff]
      %v305 = vld [vmem:[%s2 + $0x10] sm:$0xff]
      %v306 = vld [vmem:[%s2 + $0x18] sm:$0xff]
      %308 = vset.pattern.permute.xlu0 0
      %309 = vperm.xlu0 %308, %v303
      %v310 = vpop.permute.xlu0 %309
      %313 = vset.pattern.permute.xlu0 0
      %314 = vperm.xlu0 %313, %v304
      %v315 = vpop.permute.xlu0 %314
      %318 = vset.pattern.permute.xlu0 0
      %319 = vperm.xlu0 %318, %v305
      %v320 = vpop.permute.xlu0 %319
      %323 = vset.pattern.permute.xlu0 0
      %324 = vperm.xlu0 %323, %v306
      %v325 = vpop.permute.xlu0 %324
      %v327 = vadd.f32 %v299, %v310
      %v328 = vadd.f32 %v300, %v315
      %v329 = vadd.f32 %v301, %v320
      %v330 = vadd.f32 %v302, %v325
      %vm331 = vcmp.ge.f32.partialorder %v327, 0.0
      %vm332 = vcmp.ge.f32.partialorder %v328, 0.0
      %vm333 = vcmp.ge.f32.partialorder %v329, 0.0
      %vm334 = vcmp.ge.f32.partialorder %v330, 0.0
      %v335 = vmul.f32 %v327, 0.2
      %v336 = vmul.f32 %v328, 0.2
      %v337 = vmul.f32 %v329, 0.2
      %v338 = vmul.f32 %v330, 0.2
      %v339 = vsel %vm331, %v327, %v335
      %v340 = vsel %vm332, %v328, %v336
      %v341 = vsel %vm333, %v329, %v337
      %v342 = vsel %vm334, %v330, %v338
      %v343 = vld [vmem:[%s3] sm:$0xf]
      %v344 = vld [vmem:[%s3 + $0x4] sm:$0xf]
      %v345 = vld [vmem:[%s3 + $0x8] sm:$0xf]
      %v346 = vld [vmem:[%s3 + $0xc] sm:$0xf]
      %v347 = vpack.c.bf16 %v340, %v339
      %v348 = vpack.c.bf16 %v342, %v341
      %v349 = vld [vmem:[%s4] sm:$0xff]
      %v350 = vld [vmem:[%s4 + $0x8] sm:$0xff]
      %v351 = vld [vmem:[%s4 + $0x10] sm:$0xff]
      %v352 = vld [vmem:[%s4 + $0x18] sm:$0xff]
      %354 = vset.pattern.permute.xlu0 0
      %355 = vperm.xlu0 %354, %v349
      %v356 = vpop.permute.xlu0 %355
      %359 = vset.pattern.permute.xlu0 0
      %360 = vperm.xlu0 %359, %v350
      %v361 = vpop.permute.xlu0 %360
      %364 = vset.pattern.permute.xlu0 0
      %365 = vperm.xlu0 %364, %v351
      %v366 = vpop.permute.xlu0 %365
      %369 = vset.pattern.permute.xlu0 0
      %370 = vperm.xlu0 %369, %v352
      %v371 = vpop.permute.xlu0 %370
      %v377 = vunpack.c.l.b16 %v343
      %v378 = vunpack.c.l.b16 %v344
      %v379 = vunpack.c.l.b16 %v345
      %v380 = vunpack.c.l.b16 %v346
      %v381 = vpack.c.b16 %v378, %v377
      %v382 = vpack.c.b16 %v380, %v379
      %vm383 = vcmask 261120
      %v385 = vsel %vm383, %v381, 0
      %v388 = vsel %vm383, %v382, 0
      %390 = vmatpush.bf16.msra.mxu0 0
      %391 = vmatpush.bf16.msra.mxu0 0
      %392 = vmatpush.bf16.msra.mxu0 0
      %393 = vmatpush.bf16.msra.mxu0 0
      %394 = vmatpush.bf16.msra.mxu0 0
      %395 = vmatpush.bf16.msra.mxu0 0
      %396 = vmatpush.bf16.msra.mxu0 %v348
      %397 = vmatpush.bf16.msra.mxu0 %v347
      %398 = vmatmul.bf16.gmra.mxu0 %v385
      %v399 = vpop.f32.mrf.mxu0
      %v400 = vadd.f32 %v356, %v399
      %v401 = vpop.f32.mrf.mxu0
      %v402 = vadd.f32 %v361, %v401
      %403 = vmatmul.bf16.gmra.mxu0 %v388
      %v404 = vpop.f32.mrf.mxu0
      %v405 = vadd.f32 %v366, %v404
      %v406 = vpop.f32.mrf.mxu0
      %v407 = vadd.f32 %v371, %v406
      %408 = vdwg.mxu0
      %v409 = vpack.c.bf16 %v400, %v400
      %v410 = vpack.c.bf16 %v402, %v402
      %v411 = vpack.c.bf16 %v405, %v405
      %v412 = vpack.c.bf16 %v407, %v407
      %vm413 = vcmask 125952
      %414 = vst.msk [vmem:[%s221] sm:$0xf] %vm413, %v409
      %415 = vst.msk [vmem:[%s221 + $0x4] sm:$0xf] %vm413, %v410
      %416 = vst.msk [vmem:[%s221 + $0x8] sm:$0xf] %vm413, %v411
      %417 = vst.msk [vmem:[%s221 + $0xc] sm:$0xf] %vm413, %v412
      %p418 = scmp.lt.s32.totalorder %s16, 3
      %s419 = scalar_select %p418, %s16, 3
      %s420 = smul.addr %s419, 4
      %s421 = smul.addr %s420, 4
      %s422 = scalar_lea.vmem %s5, %s421
      // Predicated region
      $region41: #{tpu_custom_call.1} parent=39 // pred_check
        %p423 = pneg %p144
      $region42: #{tpu_custom_call.1} parent=39 // pred_check_branch
        %425 = sbr.rel (%p423) target = $region44
      $region43: #{tpu_custom_call.1} parent=39 // pred_region
        _
      $region44: #{tpu_custom_call.1} parent=39 // pred_fallthru
        _
    $region40: #{tpu_custom_call.1} parent=5 // pred_fallthru
      _
    %p426 = scmp.le.s32.totalorder 2, %s11
    // Predicated region
    $region45: #{tpu_custom_call.1} parent=5 // pred_check
      %p427 = pneg %p426
    $region46: #{tpu_custom_call.1} parent=5 // pred_check_branch
      %429 = sbr.rel (%p427) target = $region48
    $region47: #{tpu_custom_call.1} parent=5 // pred_region
      %s430 = ssub.s32 %s11, 2
      // Predicated region
      $region49: #{tpu_custom_call.1} parent=47 // pred_check
        %p431 = pneg %p150
      $region50: #{tpu_custom_call.1} parent=47 // pred_check_branch
        %433 = sbr.rel (%p431) target = $region52
      $region51: #{tpu_custom_call.1} parent=47 // pred_region
        %p434 = scmp.lt.s32.totalorder %s17, 3
        %s435 = scalar_select %p434, %s17, 3
        %s436 = smul.addr %s435, 4
        %s437 = smul.addr %s436, 4
        %s438 = scalar_lea.vmem %s5, %s437
      $region52: #{tpu_custom_call.1} parent=47 // pred_fallthru
        _
    $region48: #{tpu_custom_call.1} parent=5 // pred_fallthru
      _
  $region6: #{tpu_custom_call.1} parent=0 // loop_footer
    %s15 = sadd.s32 1, %s11
  $region7: #{tpu_custom_call.1} parent=0 // loop_footer_branch
    %10 = sbr.rel target = $region3
  $region8: #{tpu_custom_call.1} parent=0 // loop_exit
    _

</llo_original>
